<compile_context>
chip_gen: v5e
topology: v5e:2x2
jax: 0.10.0
libtpu: 0.0.40
codegen_flags: <defaults>
</compile_context>

<pallas_src>
import functools

import jax
import jax.numpy as jnp
from jax.experimental import pallas as pl
from jax.experimental.pallas import tpu as pltpu

PAD = 128            # lane-aligned feature width for every hidden/output layer
MAX_TILE_B = 2048    # max batch rows per grid step (double-buffered x+out ~2 MiB)
MIN_SPLIT_B = 512    # split the grid into >=2 steps once B reaches this (v7x megacore)


def ffnn_kernel(x_ref, w1_ref, w2_ref, w3_ref, w4_ref, bias_ref, out_ref):
    """One batch tile: x (TB, input_size) f32 -> logits (TB, 128) bf16.

    Weights (bf16) and the packed bias tile (f32) are VMEM-resident across the
    whole grid (constant index_map)."""
    b = bias_ref[...]                                   # (8, 128) f32; rows 0..3 = b1'..b4'
    x = x_ref[...].astype(jnp.bfloat16)                 # (TB, input_size)

    # fc1 (+ folded bn1) -> relu        (dropout1 is identity in eval)
    h = jnp.dot(x, w1_ref[...], preferred_element_type=jnp.float32) + b[0:1, :]
    h = jnp.maximum(h, 0.0)
    # fc2 (+ folded bn2) -> relu        (dropout2 is identity in eval)
    h = jnp.dot(h.astype(jnp.bfloat16), w2_ref[...],
                preferred_element_type=jnp.float32) + b[1:2, :]
    h = jnp.maximum(h, 0.0)
    # fc3 (+ folded bn3) -> relu
    h = jnp.dot(h.astype(jnp.bfloat16), w3_ref[...],
                preferred_element_type=jnp.float32) + b[2:3, :]
    h = jnp.maximum(h, 0.0)
    # fc4 (logits, no activation); store lane-dense bf16
    out = jnp.dot(h.astype(jnp.bfloat16), w4_ref[...],
                  preferred_element_type=jnp.float32) + b[3:4, :]
    out_ref[...] = out.astype(out_ref.dtype)


def fold_and_pad_params(params):
    """Host-side, one-time: fold BN (eval stats) into the linears, pad, cast to bf16."""
    def fold(w, b, s, t):
        # y = (x@W + b)*s + t == x@(W*s) + (b*s + t)
        return w * s, b * s + t

    w1, b1 = fold(params["w1"], params["b1"], params["s1"], params["t1"])
    w2, b2 = fold(params["w2"], params["b2"], params["s2"], params["t2"])
    w3, b3 = fold(params["w3"], params["b3"], params["s3"], params["t3"])
    w4, b4 = params["w4"], params["b4"]

    def pad_w(w, k_pad):
        out = jnp.zeros((k_pad, PAD), jnp.float32)
        out = out.at[: w.shape[0], : w.shape[1]].set(w.astype(jnp.float32))
        return out.astype(jnp.bfloat16)                  # MXU-native operand dtype

    def pad_b(b):
        out = jnp.zeros((PAD,), jnp.float32)
        return out.at[: b.shape[-1]].set(b.reshape(-1).astype(jnp.float32))

    # w1 keeps its true K (= input_size) so x never has to be lane-padded on
    # the host; w2..w4 are padded to 128x128 (resident, negligible VMEM).
    folded = dict(
        w1=pad_w(w1, w1.shape[0]),
        w2=pad_w(w2, PAD),
        w3=pad_w(w3, PAD),
        w4=pad_w(w4, PAD),
    )

    bias = jnp.zeros((8, PAD), jnp.float32)              # one vreg-tile-sized operand
    bias = (bias.at[0].set(pad_b(b1))
                .at[1].set(pad_b(b2))
                .at[2].set(pad_b(b3))
                .at[3].set(pad_b(b4)))
    folded["bias"] = bias
    return folded


@functools.partial(jax.jit, static_argnames=("num_labels",))
def basic_ffnn_forward(x, folded, *, num_labels):
    """x: (B, input_size) float; folded: output of fold_and_pad_params. Returns bf16 logits."""
    B, input_size = x.shape

    # Balanced batch tiling: tail tile is never mostly padding, TB is a
    # multiple of 16 (bf16 sublane pair), and large batches always get >=2
    # grid steps so v7x's two TensorCores both work.
    n_tiles = -(-B // MAX_TILE_B)
    if B >= MIN_SPLIT_B:
        n_tiles = max(n_tiles, 2)
    TB = ((-(-B // n_tiles) + 15) // 16) * 16
    padded_B = n_tiles * TB

    xp = x.astype(jnp.float32)
    if padded_B != B:
        # Pad batch rows only (zeros); padded rows are row-independent garbage
        # that gets sliced off below.
        xp = jnp.pad(xp, ((0, padded_B - B), (0, 0)))

    resident = lambda i: (0, 0)   # weights/bias: same block every step -> stay in VMEM

    out = pl.pallas_call(
        ffnn_kernel,
        out_shape=jax.ShapeDtypeStruct((padded_B, PAD), jnp.bfloat16),
        grid=(n_tiles,),
        in_specs=[
            pl.BlockSpec((TB, input_size), lambda i: (i, 0)),   # x: tiled over batch, true width
            pl.BlockSpec((input_size, PAD), resident),          # w1' (bf16)
            pl.BlockSpec((PAD, PAD), resident),                 # w2' (bf16)
            pl.BlockSpec((PAD, PAD), resident),                 # w3' (bf16)
            pl.BlockSpec((PAD, PAD), resident),                 # w4  (bf16)
            pl.BlockSpec((8, PAD), resident),                   # packed f32 biases
        ],
        out_specs=pl.BlockSpec((TB, PAD), lambda i: (i, 0)),
        compiler_params=pltpu.CompilerParams(
            dimension_semantics=("parallel",),                  # batch axis -> both TCs on v7x
        ),
    )(xp, folded["w1"], folded["w2"], folded["w3"], folded["w4"], folded["bias"])

    return out[:B, :num_labels]


def init_params(key, input_size, num_labels):
    """Deterministic synthetic parameters (PyTorch-like uniform init + BN eval stats)."""
    def linear(key, fan_in, fan_out):
        kw, kb = jax.random.split(key)
        bound = 1.0 / jnp.sqrt(jnp.float32(fan_in))
        w = jax.random.uniform(kw, (fan_in, fan_out), jnp.float32, -bound, bound)
        b = jax.random.uniform(kb, (1, fan_out), jnp.float32, -bound, bound)
        return w, b

    def bn_scale_shift(key, feat, eps=1e-5):
        # BatchNorm1d eval: y = gamma * (x - mean) / sqrt(var + eps) + beta
        kg, kb, km, kv = jax.random.split(key, 4)
        gamma = 1.0 + 0.1 * jax.random.normal(kg, (1, feat), jnp.float32)
        beta = 0.1 * jax.random.normal(kb, (1, feat), jnp.float32)
        mean = 0.1 * jax.random.normal(km, (1, feat), jnp.float32)
        var = jnp.abs(1.0 + 0.1 * jax.random.normal(kv, (1, feat), jnp.float32))
        scale = gamma / jnp.sqrt(var + eps)
        shift = beta - mean * scale
        return scale, shift

    keys = jax.random.split(key, 7)
    w1, b1 = linear(keys[0], input_size, 64)
    s1, t1 = bn_scale_shift(keys[1], 64)
    w2, b2 = linear(keys[2], 64, 32)
    s2, t2 = bn_scale_shift(keys[3], 32)
    w3, b3 = linear(keys[4], 32, 32)
    s3, t3 = bn_scale_shift(keys[5], 32)
    w4, b4 = linear(keys[6], 32, num_labels)
    return dict(w1=w1, b1=b1, s1=s1, t1=t1,
                w2=w2, b2=b2, s2=s2, t2=t2,
                w3=w3, b3=b3, s3=s3, t3=t3,
                w4=w4, b4=b4)


def reference_forward(x, p):
    """Un-fused, un-padded, full-f32 JAX reference (matches the PyTorch eval forward)."""
    h = jnp.maximum((x @ p["w1"] + p["b1"]) * p["s1"] + p["t1"], 0.0)
    h = jnp.maximum((h @ p["w2"] + p["b2"]) * p["s2"] + p["t2"], 0.0)
    h = jnp.maximum((h @ p["w3"] + p["b3"]) * p["s3"] + p["t3"], 0.0)
    return h @ p["w4"] + p["b4"]


if __name__ == "__main__":
    # TODO(synk): dropout layers are identity (eval mode); BatchNorm1d uses folded
    # running stats — training-mode batch statistics are not implemented.
    input_size = 39     # inpsize39 from the checkpoint path
    num_labels = 10
    batch = 8

    key = jax.random.PRNGKey(0)
    kx, kp = jax.random.split(key)
    x = jax.random.normal(kx, (batch, input_size), jnp.float32)
    params = init_params(kp, input_size, num_labels)

    folded = fold_and_pad_params(params)   # one-time host-side fold + pad + bf16 cast

    out = basic_ffnn_forward(x, folded, num_labels=num_labels)
    out = jax.block_until_ready(out)

    ref = reference_forward(x, params)
    assert out.shape == (batch, num_labels)
    # bf16 operands / bf16 output -> widened tolerance vs the f32 reference.
    assert jnp.allclose(out.astype(jnp.float32), ref, atol=3e-2, rtol=3e-2), \
        "mismatch vs JAX reference"

    print("KERNEL_OK")
</pallas_src>

<mosaic_0001>
module attributes {stable_mosaic.version = 11 : i64} {
  func.func @ffnn_kernel(%arg0: i32, %arg1: memref<16x39xf32, #tpu.memory_space<vmem>>, %arg2: memref<39x128xbf16, #tpu.memory_space<vmem>>, %arg3: memref<128x128xbf16, #tpu.memory_space<vmem>>, %arg4: memref<128x128xbf16, #tpu.memory_space<vmem>>, %arg5: memref<128x128xbf16, #tpu.memory_space<vmem>>, %arg6: memref<8x128xf32, #tpu.memory_space<vmem>>, %arg7: memref<16x128xbf16, #tpu.memory_space<vmem>>) attributes {dimension_semantics = [#tpu.dimension_semantics<parallel>], iteration_bounds = array<i64: 1>, scalar_prefetch = 0 : i64, scratch_operands = 0 : i64, tpu.core_type = #tpu.core_type<tc>, window_params = [{transform_indices = @transform_0, window_bounds = array<i64: 16, 39>}, {pipeline_mode = #tpu.pipeline_mode<synchronous>, transform_indices = @transform_1, window_bounds = array<i64: 39, 128>}, {pipeline_mode = #tpu.pipeline_mode<synchronous>, transform_indices = @transform_2, window_bounds = array<i64: 128, 128>}, {pipeline_mode = #tpu.pipeline_mode<synchronous>, transform_indices = @transform_3, window_bounds = array<i64: 128, 128>}, {pipeline_mode = #tpu.pipeline_mode<synchronous>, transform_indices = @transform_4, window_bounds = array<i64: 128, 128>}, {pipeline_mode = #tpu.pipeline_mode<synchronous>, transform_indices = @transform_5, window_bounds = array<i64: 8, 128>}, {transform_indices = @transform_6, window_bounds = array<i64: 16, 128>}]} {
    %c0 = arith.constant 0 : index
    %c0_0 = arith.constant 0 : index
    %0 = vector.load %arg6[%c0, %c0_0] : memref<8x128xf32, #tpu.memory_space<vmem>>, vector<8x128xf32>
    %c0_1 = arith.constant 0 : index
    %c0_2 = arith.constant 0 : index
    %1 = vector.load %arg1[%c0_1, %c0_2] : memref<16x39xf32, #tpu.memory_space<vmem>>, vector<16x39xf32>
    %2 = arith.truncf %1 : vector<16x39xf32> to vector<16x39xbf16>
    %c0_3 = arith.constant 0 : index
    %c0_4 = arith.constant 0 : index
    %3 = vector.load %arg2[%c0_3, %c0_4] : memref<39x128xbf16, #tpu.memory_space<vmem>>, vector<39x128xbf16>
    %cst = arith.constant dense<0.000000e+00> : vector<16x128xf32>
    %4 = tpu.matmul %2, %3, %cst {dimension_numbers = #tpu.dot_dimension_numbers<[1], [0], [0], [1], [0, 0, 1, 1], [], []>} : vector<16x39xbf16>, vector<39x128xbf16>, vector<16x128xf32> -> vector<16x128xf32>
    %5 = vector.extract_strided_slice %0 {offsets = [0, 0], sizes = [1, 128], strides = [1, 1]} : vector<8x128xf32> to vector<1x128xf32>
    %6 = vector.broadcast %5 : vector<1x128xf32> to vector<16x128xf32>
    %7 = arith.addf %4, %6 : vector<16x128xf32>
    %cst_5 = arith.constant 0.000000e+00 : f32
    %8 = vector.broadcast %cst_5 : f32 to vector<16x128xf32>
    %9 = arith.maximumf %7, %8 : vector<16x128xf32>
    %10 = arith.truncf %9 : vector<16x128xf32> to vector<16x128xbf16>
    %c0_6 = arith.constant 0 : index
    %c0_7 = arith.constant 0 : index
    %11 = vector.load %arg3[%c0_6, %c0_7] : memref<128x128xbf16, #tpu.memory_space<vmem>>, vector<128x128xbf16>
    %cst_8 = arith.constant dense<0.000000e+00> : vector<16x128xf32>
    %12 = tpu.matmul %10, %11, %cst_8 {dimension_numbers = #tpu.dot_dimension_numbers<[1], [0], [0], [1], [0, 0, 1, 1], [], []>} : vector<16x128xbf16>, vector<128x128xbf16>, vector<16x128xf32> -> vector<16x128xf32>
    %13 = vector.extract_strided_slice %0 {offsets = [1, 0], sizes = [1, 128], strides = [1, 1]} : vector<8x128xf32> to vector<1x128xf32>
    %14 = vector.broadcast %13 : vector<1x128xf32> to vector<16x128xf32>
    %15 = arith.addf %12, %14 : vector<16x128xf32>
    %cst_9 = arith.constant 0.000000e+00 : f32
    %16 = vector.broadcast %cst_9 : f32 to vector<16x128xf32>
    %17 = arith.maximumf %15, %16 : vector<16x128xf32>
    %18 = arith.truncf %17 : vector<16x128xf32> to vector<16x128xbf16>
    %c0_10 = arith.constant 0 : index
    %c0_11 = arith.constant 0 : index
    %19 = vector.load %arg4[%c0_10, %c0_11] : memref<128x128xbf16, #tpu.memory_space<vmem>>, vector<128x128xbf16>
    %cst_12 = arith.constant dense<0.000000e+00> : vector<16x128xf32>
    %20 = tpu.matmul %18, %19, %cst_12 {dimension_numbers = #tpu.dot_dimension_numbers<[1], [0], [0], [1], [0, 0, 1, 1], [], []>} : vector<16x128xbf16>, vector<128x128xbf16>, vector<16x128xf32> -> vector<16x128xf32>
    %21 = vector.extract_strided_slice %0 {offsets = [2, 0], sizes = [1, 128], strides = [1, 1]} : vector<8x128xf32> to vector<1x128xf32>
    %22 = vector.broadcast %21 : vector<1x128xf32> to vector<16x128xf32>
    %23 = arith.addf %20, %22 : vector<16x128xf32>
    %cst_13 = arith.constant 0.000000e+00 : f32
    %24 = vector.broadcast %cst_13 : f32 to vector<16x128xf32>
    %25 = arith.maximumf %23, %24 : vector<16x128xf32>
    %26 = arith.truncf %25 : vector<16x128xf32> to vector<16x128xbf16>
    %c0_14 = arith.constant 0 : index
    %c0_15 = arith.constant 0 : index
    %27 = vector.load %arg5[%c0_14, %c0_15] : memref<128x128xbf16, #tpu.memory_space<vmem>>, vector<128x128xbf16>
    %cst_16 = arith.constant dense<0.000000e+00> : vector<16x128xf32>
    %28 = tpu.matmul %26, %27, %cst_16 {dimension_numbers = #tpu.dot_dimension_numbers<[1], [0], [0], [1], [0, 0, 1, 1], [], []>} : vector<16x128xbf16>, vector<128x128xbf16>, vector<16x128xf32> -> vector<16x128xf32>
    %29 = vector.extract_strided_slice %0 {offsets = [3, 0], sizes = [1, 128], strides = [1, 1]} : vector<8x128xf32> to vector<1x128xf32>
    %30 = vector.broadcast %29 : vector<1x128xf32> to vector<16x128xf32>
    %31 = arith.addf %28, %30 : vector<16x128xf32>
    %32 = arith.truncf %31 : vector<16x128xf32> to vector<16x128xbf16>
    %c0_17 = arith.constant 0 : index
    %c0_18 = arith.constant 0 : index
    %33 = vector.load %arg7[%c0_17, %c0_18] : memref<16x128xbf16, #tpu.memory_space<vmem>>, vector<16x128xbf16>
    tpu.vector_store %arg7[%c0_17, %c0_18], %32 {strides = array<i32>} : memref<16x128xbf16, #tpu.memory_space<vmem>>, vector<16x128xbf16>,
    return
  }
  func.func @transform_0(%arg0: i32) -> (i32, i32) {
    %c0_i32 = arith.constant 0 : i32
    %c0_i32_0 = arith.constant 0 : i32
    return %arg0, %c0_i32 : i32, i32
  }
  func.func @transform_1(%arg0: i32) -> (i32, i32) {
    %c0_i32 = arith.constant 0 : i32
    %c0_i32_0 = arith.constant 0 : i32
    %c0_i32_1 = arith.constant 0 : i32
    return %c0_i32, %c0_i32_0 : i32, i32
  }
  func.func @transform_2(%arg0: i32) -> (i32, i32) {
    %c0_i32 = arith.constant 0 : i32
    %c0_i32_0 = arith.constant 0 : i32
    %c0_i32_1 = arith.constant 0 : i32
    return %c0_i32, %c0_i32_0 : i32, i32
  }
  func.func @transform_3(%arg0: i32) -> (i32, i32) {
    %c0_i32 = arith.constant 0 : i32
    %c0_i32_0 = arith.constant 0 : i32
    %c0_i32_1 = arith.constant 0 : i32
    return %c0_i32, %c0_i32_0 : i32, i32
  }
  func.func @transform_4(%arg0: i32) -> (i32, i32) {
    %c0_i32 = arith.constant 0 : i32
    %c0_i32_0 = arith.constant 0 : i32
    %c0_i32_1 = arith.constant 0 : i32
    return %c0_i32, %c0_i32_0 : i32, i32
  }
  func.func @transform_5(%arg0: i32) -> (i32, i32) {
    %c0_i32 = arith.constant 0 : i32
    %c0_i32_0 = arith.constant 0 : i32
    %c0_i32_1 = arith.constant 0 : i32
    return %c0_i32, %c0_i32_0 : i32, i32
  }
  func.func @transform_6(%arg0: i32) -> (i32, i32) {
    %c0_i32 = arith.constant 0 : i32
    %c0_i32_0 = arith.constant 0 : i32
    return %arg0, %c0_i32 : i32, i32
  }
}

</mosaic_0001>

<llo_original>
// kernel: basic_ffnn_forward.1
$region0: #{basic_ffnn_forward.1}
  #allocation0 [shape = 'u32[]', space=smem, size = 0x4, offset = 0x4, fixed_abs, tag = 'smem constant byte address 0x4 - core index']
  #allocation1 [shape = 'u32[72,128]{1,0:T(1,128)}', space=vmem, size = 0x9000, scoped, tag = 'internal scratch']
  %s0 = inlined_call_operand.vmem [shape: f32[16,39], index: 0, kind: input, shape index: {}]
  %s1 = inlined_call_operand.vmem [shape: bf16[39,128], index: 1, kind: input, shape index: {}]
  %s2 = inlined_call_operand.hbm [shape: bf16[128,128], index: 2, kind: input, shape index: {}]
  %s3 = inlined_call_operand.hbm [shape: bf16[128,128], index: 3, kind: input, shape index: {}]
  %s4 = inlined_call_operand.hbm [shape: bf16[128,128], index: 4, kind: input, shape index: {}]
  %s5 = inlined_call_operand.hbm [shape: f32[8,128], index: 5, kind: input, shape index: {}]
  %s6 = inlined_call_operand.vmem [shape: bf16[16,128], index: 6, kind: output, shape index: {}]
  %s7 = sld [smem:[#allocation0]]
  $region50: #{basic_ffnn_forward.1} parent=0
    _
  %s9 = ssub.s32 1, %s7
  %s10 = scalar_select 0, %s9, %s7
  $region1: #{basic_ffnn_forward.1} parent=0
    #allocation2 [shape = 'u8[32768]{0}', space=vmem, size = 0x8000, scoped, tag = 'input window, operand 2, single buffered']
    #allocation3 [shape = 's32[1]{0}', space=sflag, size = 0x4, scoped, tag = 'scoped memory for basic_ffnn_forward.1']
    #allocation4 [shape = 'u8[32768]{0}', space=vmem, size = 0x8000, scoped, tag = 'input window, operand 3, single buffered']
    #allocation5 [shape = 's32[1]{0}', space=sflag, size = 0x4, scoped, tag = 'scoped memory for basic_ffnn_forward.1']
    #allocation6 [shape = 'u8[32768]{0}', space=vmem, size = 0x8000, scoped, tag = 'input window, operand 4, single buffered']
    #allocation7 [shape = 'u8[4096]{0}', space=vmem, size = 0x1000, scoped, tag = 'input window, operand 5, single buffered']
    #allocation8 [shape = 's32[1]{0}', space=sflag, size = 0x4, scoped, tag = 'scoped memory for basic_ffnn_forward.1']
    %11 = vsyncpa [#allocation3], 0
    %12 = vsyncpa [#allocation5], 0
    %13 = vsyncpa [#allocation8], 0
    // Predicated region
    $region2: #{basic_ffnn_forward.1} parent=1 // pred_check
      _
    $region3: #{basic_ffnn_forward.1} parent=1 // pred_check_branch
      %15 = sbr.rel (0) target = $region5
    $region4: #{basic_ffnn_forward.1} parent=1 // pred_region
      _
    $region5: #{basic_ffnn_forward.1} parent=1 // pred_fallthru
      _
    // Predicated region
    $region6: #{basic_ffnn_forward.1} parent=1 // pred_check
      _
    $region7: #{basic_ffnn_forward.1} parent=1 // pred_check_branch
      %17 = sbr.rel (0) target = $region9
    $region8: #{basic_ffnn_forward.1} parent=1 // pred_region
      _
    $region9: #{basic_ffnn_forward.1} parent=1 // pred_fallthru
      _
    // Predicated region
    $region10: #{basic_ffnn_forward.1} parent=1 // pred_check
      _
    $region11: #{basic_ffnn_forward.1} parent=1 // pred_check_branch
      %19 = sbr.rel (0) target = $region13
    $region12: #{basic_ffnn_forward.1} parent=1 // pred_region
      %21 = vsyncadd [#allocation3], 0
      %s22 = sshll.u32 %s2, 4
      %s23 = int_to_ptr.hbm [resolvable:$true] %s22
      %s24 = sshll.u32 [#allocation2], 4
      %s25 = int_to_ptr.vmem [resolvable:$true] %s24
      %30 = dma.hbm_to_vmem [thread:$0]  %s23, 1024, %s25, [#allocation3], 64, 64, 4
    $region13: #{basic_ffnn_forward.1} parent=1 // pred_fallthru
      _
    // Predicated region
    $region14: #{basic_ffnn_forward.1} parent=1 // pred_check
      _
    $region15: #{basic_ffnn_forward.1} parent=1 // pred_check_branch
      %32 = sbr.rel (0) target = $region17
    $region16: #{basic_ffnn_forward.1} parent=1 // pred_region
      %34 = vsyncadd [#allocation5], 0
      %s35 = sshll.u32 %s3, 4
      %s36 = int_to_ptr.hbm [resolvable:$true] %s35
      %s37 = sshll.u32 [#allocation4], 4
      %s38 = int_to_ptr.vmem [resolvable:$true] %s37
      %43 = dma.hbm_to_vmem [thread:$0]  %s36, 1024, %s38, [#allocation5], 64, 64, 4
    $region17: #{basic_ffnn_forward.1} parent=1 // pred_fallthru
      _
    // Predicated region
    $region18: #{basic_ffnn_forward.1} parent=1 // pred_check
      _
    $region19: #{basic_ffnn_forward.1} parent=1 // pred_check_branch
      %45 = sbr.rel (0) target = $region21
    $region20: #{basic_ffnn_forward.1} parent=1 // pred_region
      %47 = vsyncadd [#allocation5], 0
      %s48 = sshll.u32 %s4, 4
      %s49 = int_to_ptr.hbm [resolvable:$true] %s48
      %s50 = sshll.u32 [#allocation6], 4
      %s51 = int_to_ptr.vmem [resolvable:$true] %s50
      %56 = dma.hbm_to_vmem [thread:$0]  %s49, 1024, %s51, [#allocation5], 64, 64, 4
    $region21: #{basic_ffnn_forward.1} parent=1 // pred_fallthru
      _
    // Predicated region
    $region22: #{basic_ffnn_forward.1} parent=1 // pred_check
      _
    $region23: #{basic_ffnn_forward.1} parent=1 // pred_check_branch
      %58 = sbr.rel (0) target = $region25
    $region24: #{basic_ffnn_forward.1} parent=1 // pred_region
      %60 = vsyncadd [#allocation8], 0
      %s62 = sshll.u32 %s5, 4
      %s63 = int_to_ptr.hbm [resolvable:$true] %s62
      %s64 = sshll.u32 [#allocation7], 4
      %s65 = int_to_ptr.vmem [resolvable:$true] %s64
      %67 = dma.hbm_to_vmem [thread:$0]  %s63, 128, %s65, [#allocation8]
    $region25: #{basic_ffnn_forward.1} parent=1 // pred_fallthru
      _
    // Predicated region
    $region26: #{basic_ffnn_forward.1} parent=1 // pred_check
      _
    $region27: #{basic_ffnn_forward.1} parent=1 // pred_check_branch
      %69 = sbr.rel (0) target = $region29
    $region28: #{basic_ffnn_forward.1} parent=1 // pred_region
      %71 = dma.done [#allocation3], 1024
    $region29: #{basic_ffnn_forward.1} parent=1 // pred_fallthru
      _
    // Predicated region
    $region30: #{basic_ffnn_forward.1} parent=1 // pred_check
      _
    $region31: #{basic_ffnn_forward.1} parent=1 // pred_check_branch
      %73 = sbr.rel (0) target = $region33
    $region32: #{basic_ffnn_forward.1} parent=1 // pred_region
      %75 = dma.done [#allocation5], 1024
    $region33: #{basic_ffnn_forward.1} parent=1 // pred_fallthru
      _
    // Predicated region
    $region34: #{basic_ffnn_forward.1} parent=1 // pred_check
      _
    $region35: #{basic_ffnn_forward.1} parent=1 // pred_check_branch
      %77 = sbr.rel (0) target = $region37
    $region36: #{basic_ffnn_forward.1} parent=1 // pred_region
      %79 = dma.done [#allocation5], 1024
    $region37: #{basic_ffnn_forward.1} parent=1 // pred_fallthru
      _
    // Predicated region
    $region38: #{basic_ffnn_forward.1} parent=1 // pred_check
      _
    $region39: #{basic_ffnn_forward.1} parent=1 // pred_check_branch
      %81 = sbr.rel (0) target = $region41
    $region40: #{basic_ffnn_forward.1} parent=1 // pred_region
      %83 = dma.done [#allocation8], 128
    $region41: #{basic_ffnn_forward.1} parent=1 // pred_fallthru
      _
    %v85 = vld [vmem:[#allocation7] sm:$0xff]
    %v86 = vld [vmem:[%s0] sm:$0xff]
    %v87 = vld [vmem:[%s0 + $0x8] sm:$0xff]
    %v88 = vpack.c.bf16 %v87, %v86
    %v89 = vld [vmem:[%s1] sm:$0xf]
    %v90 = vld [vmem:[%s1 + $0x4] sm:$0xf]
    %v91 = vld [vmem:[%s1 + $0x8] sm:$0xf]
    %v92 = vld [vmem:[%s1 + $0xc] sm:$0xf]
    %v93 = vld [vmem:[%s1 + $0x10] sm:$0xf]
    %v94 = vperm.slane %v85, 0
    %v100 = vunpack.c.l.b16 %v89
    %v101 = vunpack.c.l.b16 %v90
    %v102 = vunpack.c.l.b16 %v91
    %v103 = vunpack.c.l.b16 %v92
    %v104 = vunpack.c.l.b16 %v93
    %v105 = vpack.c.b16 %v101, %v100
    %v106 = vpack.c.b16 %v103, %v102
    %v107 = vpack.c.b16 %v104, %v104
    %vm110 = vcmask 318464
    %v112 = vsel %vm110, %v88, 0
    %vm114 = vcmask 1042432
    %vm115 = vcmask 1043456
    %v116 = vsel %vm114, 4294967295, 65535
    %v117 = vsel %vm115, %v116, 0
    %v119 = vand.u32 %v107, %v117
    %121 = vmatpush.bf16.msra.mxu0 0
    %122 = vmatpush.bf16.msra.mxu0 0
    %123 = vmatpush.bf16.msra.mxu0 0
    %124 = vmatpush.bf16.msra.mxu0 0
    %125 = vmatpush.bf16.msra.mxu0 0
    %126 = vmatpush.bf16.msra.mxu0 %v119
    %127 = vmatpush.bf16.msra.mxu0 %v106
    %128 = vmatpush.bf16.msra.mxu0 %v105
    %129 = vmatmul.bf16.gmra.mxu0 %v112
    %v130 = vpop.f32.mrf.mxu0
    %v131 = vadd.f32 %v94, %v130
    %v132 = vpop.f32.mrf.mxu0
    %v133 = vadd.f32 %v94, %v132
    %134 = vdwg.mxu0
    %v135 = vmax.f32 %v131, 0.0
    %v136 = vmax.f32 %v133, 0.0
    %v137 = vpack.c.bf16 %v136, %v135
    %v138 = vld [vmem:[#allocation2] sm:$0xf]
    %v139 = vld [vmem:[#allocation2 + $0x4] sm:$0xf]
    %v140 = vld [vmem:[#allocation2 + $0x8] sm:$0xf]
    %v141 = vld [vmem:[#allocation2 + $0xc] sm:$0xf]
    %v142 = vld [vmem:[#allocation2 + $0x10] sm:$0xf]
    %v143 = vld [vmem:[#allocation2 + $0x14] sm:$0xf]
    %v144 = vld [vmem:[#allocation2 + $0x18] sm:$0xf]
    %v145 = vld [vmem:[#allocation2 + $0x1c] sm:$0xf]
    %v146 = vld [vmem:[#allocation2 + $0x20] sm:$0xf]
    %v147 = vld [vmem:[#allocation2 + $0x24] sm:$0xf]
    %v148 = vld [vmem:[#allocation2 + $0x28] sm:$0xf]
    %v149 = vld [vmem:[#allocation2 + $0x2c] sm:$0xf]
    %v150 = vld [vmem:[#allocation2 + $0x30] sm:$0xf]
    %v151 = vld [vmem:[#allocation2 + $0x34] sm:$0xf]
    %v152 = vld [vmem:[#allocation2 + $0x38] sm:$0xf]
    %v153 = vld [vmem:[#allocation2 + $0x3c] sm:$0xf]
    %v154 = vperm.slane %v85, 1
    %v171 = vunpack.c.l.b16 %v138
    %v172 = vunpack.c.l.b16 %v139
    %v173 = vunpack.c.l.b16 %v140
    %v174 = vunpack.c.l.b16 %v141
    %v175 = vunpack.c.l.b16 %v142
    %v176 = vunpack.c.l.b16 %v143
    %v177 = vunpack.c.l.b16 %v144
    %v178 = vunpack.c.l.b16 %v145
    %v179 = vunpack.c.l.b16 %v146
    %v180 = vunpack.c.l.b16 %v147
    %v181 = vunpack.c.l.b16 %v148
    %v182 = vunpack.c.l.b16 %v149
    %v183 = vunpack.c.l.b16 %v150
    %v184 = vunpack.c.l.b16 %v151
    %v185 = vunpack.c.l.b16 %v152
    %v186 = vunpack.c.l.b16 %v153
    %v187 = vpack.c.b16 %v172, %v171
    %v188 = vpack.c.b16 %v174, %v173
    %v189 = vpack.c.b16 %v176, %v175
    %v190 = vpack.c.b16 %v178, %v177
    %v191 = vpack.c.b16 %v180, %v179
    %v192 = vpack.c.b16 %v182, %v181
    %v193 = vpack.c.b16 %v184, %v183
    %v194 = vpack.c.b16 %v186, %v185
    %203 = vmatpush.bf16.msra.mxu0 %v194
    %204 = vmatpush.bf16.msra.mxu0 %v193
    %205 = vmatpush.bf16.msra.mxu0 %v192
    %206 = vmatpush.bf16.msra.mxu0 %v191
    %207 = vmatpush.bf16.msra.mxu0 %v190
    %208 = vmatpush.bf16.msra.mxu0 %v189
    %209 = vmatpush.bf16.msra.mxu0 %v188
    %210 = vmatpush.bf16.msra.mxu0 %v187
    %211 = vmatmul.bf16.gmra.mxu0 %v137
    %v212 = vpop.f32.mrf.mxu0
    %v213 = vadd.f32 %v154, %v212
    %v214 = vpop.f32.mrf.mxu0
    %v215 = vadd.f32 %v154, %v214
    %216 = vdwg.mxu0
    %v217 = vmax.f32 %v213, 0.0
    %v218 = vmax.f32 %v215, 0.0
    %v219 = vpack.c.bf16 %v218, %v217
    %v220 = vld [vmem:[#allocation4] sm:$0xf]
    %v221 = vld [vmem:[#allocation4 + $0x4] sm:$0xf]
    %v222 = vld [vmem:[#allocation4 + $0x8] sm:$0xf]
    %v223 = vld [vmem:[#allocation4 + $0xc] sm:$0xf]
    %v224 = vld [vmem:[#allocation4 + $0x10] sm:$0xf]
    %v225 = vld [vmem:[#allocation4 + $0x14] sm:$0xf]
    %v226 = vld [vmem:[#allocation4 + $0x18] sm:$0xf]
    %v227 = vld [vmem:[#allocation4 + $0x1c] sm:$0xf]
    %v228 = vld [vmem:[#allocation4 + $0x20] sm:$0xf]
    %v229 = vld [vmem:[#allocation4 + $0x24] sm:$0xf]
    %v230 = vld [vmem:[#allocation4 + $0x28] sm:$0xf]
    %v231 = vld [vmem:[#allocation4 + $0x2c] sm:$0xf]
    %v232 = vld [vmem:[#allocation4 + $0x30] sm:$0xf]
    %v233 = vld [vmem:[#allocation4 + $0x34] sm:$0xf]
    %v234 = vld [vmem:[#allocation4 + $0x38] sm:$0xf]
    %v235 = vld [vmem:[#allocation4 + $0x3c] sm:$0xf]
    %v236 = vperm.slane %v85, 2
    %v253 = vunpack.c.l.b16 %v220
    %v254 = vunpack.c.l.b16 %v221
    %v255 = vunpack.c.l.b16 %v222
    %v256 = vunpack.c.l.b16 %v223
    %v257 = vunpack.c.l.b16 %v224
    %v258 = vunpack.c.l.b16 %v225
    %v259 = vunpack.c.l.b16 %v226
    %v260 = vunpack.c.l.b16 %v227
    %v261 = vunpack.c.l.b16 %v228
    %v262 = vunpack.c.l.b16 %v229
    %v263 = vunpack.c.l.b16 %v230
    %v264 = vunpack.c.l.b16 %v231
    %v265 = vunpack.c.l.b16 %v232
    %v266 = vunpack.c.l.b16 %v233
    %v267 = vunpack.c.l.b16 %v234
    %v268 = vunpack.c.l.b16 %v235
    %v269 = vpack.c.b16 %v254, %v253
    %v270 = vpack.c.b16 %v256, %v255
    %v271 = vpack.c.b16 %v258, %v257
    %v272 = vpack.c.b16 %v260, %v259
    %v273 = vpack.c.b16 %v262, %v261
    %v274 = vpack.c.b16 %v264, %v263
    %v275 = vpack.c.b16 %v266, %v265
    %v276 = vpack.c.b16 %v268, %v267
    %285 = vmatpush.bf16.msra.mxu0 %v276
    %286 = vmatpush.bf16.msra.mxu0 %v275
    %287 = vmatpush.bf16.msra.mxu0 %v274
    %288 = vmatpush.bf16.msra.mxu0 %v273
    %289 = vmatpush.bf16.msra.mxu0 %v272
    %290 = vmatpush.bf16.msra.mxu0 %v271
    %291 = vmatpush.bf16.msra.mxu0 %v270
    %292 = vmatpush.bf16.msra.mxu0 %v269
    %293 = vmatmul.bf16.gmra.mxu0 %v219
    %v294 = vpop.f32.mrf.mxu0
    %v295 = vadd.f32 %v236, %v294
    %v296 = vpop.f32.mrf.mxu0
    %v297 = vadd.f32 %v236, %v296
    %298 = vdwg.mxu0
    %v299 = vmax.f32 %v295, 0.0
    %v300 = vmax.f32 %v297, 0.0
    %v301 = vpack.c.bf16 %v300, %v299
    %v302 = vld [vmem:[#allocation6] sm:$0xf]
    %v303 = vld [vmem:[#allocation6 + $0x4] sm:$0xf]
    %v304 = vld [vmem:[#allocation6 + $0x8] sm:$0xf]
    %v305 = vld [vmem:[#allocation6 + $0xc] sm:$0xf]
    %v306 = vld [vmem:[#allocation6 + $0x10] sm:$0xf]
    %v307 = vld [vmem:[#allocation6 + $0x14] sm:$0xf]
    %v308 = vld [vmem:[#allocation6 + $0x18] sm:$0xf]
    %v309 = vld [vmem:[#allocation6 + $0x1c] sm:$0xf]
    %v310 = vld [vmem:[#allocation6 + $0x20] sm:$0xf]
    %v311 = vld [vmem:[#allocation6 + $0x24] sm:$0xf]
    %v312 = vld [vmem:[#allocation6 + $0x28] sm:$0xf]
    %v313 = vld [vmem:[#allocation6 + $0x2c] sm:$0xf]
    %v314 = vld [vmem:[#allocation6 + $0x30] sm:$0xf]
    %v315 = vld [vmem:[#allocation6 + $0x34] sm:$0xf]
    %v316 = vld [vmem:[#allocation6 + $0x38] sm:$0xf]
    %v317 = vld [vmem:[#allocation6 + $0x3c] sm:$0xf]
    %v318 = vperm.slane %v85, 3
    %v335 = vunpack.c.l.b16 %v302
    %v336 = vunpack.c.l.b16 %v303
    %v337 = vunpack.c.l.b16 %v304
    %v338 = vunpack.c.l.b16 %v305
    %v339 = vunpack.c.l.b16 %v306
    %v340 = vunpack.c.l.b16 %v307
    %v341 = vunpack.c.l.b16 %v308
    %v342 = vunpack.c.l.b16 %v309
    %v343 = vunpack.c.l.b16 %v310
    %v344 = vunpack.c.l.b16 %v311
    %v345 = vunpack.c.l.b16 %v312
    %v346 = vunpack.c.l.b16 %v313
    %v347 = vunpack.c.l.b16 %v314
    %v348 = vunpack.c.l.b16 %v315
    %v349 = vunpack.c.l.b16 %v316
    %v350 = vunpack.c.l.b16 %v317
    %v351 = vpack.c.b16 %v336, %v335
    %v352 = vpack.c.b16 %v338, %v337
    %v353 = vpack.c.b16 %v340, %v339
    %v354 = vpack.c.b16 %v342, %v341
    %v355 = vpack.c.b16 %v344, %v343
    %v356 = vpack.c.b16 %v346, %v345
    %v357 = vpack.c.b16 %v348, %v347
    %v358 = vpack.c.b16 %v350, %v349
    %367 = vmatpush.bf16.msra.mxu0 %v358
    %368 = vmatpush.bf16.msra.mxu0 %v357
    %369 = vmatpush.bf16.msra.mxu0 %v356
    %370 = vmatpush.bf16.msra.mxu0 %v355
    %371 = vmatpush.bf16.msra.mxu0 %v354
    %372 = vmatpush.bf16.msra.mxu0 %v353
    %373 = vmatpush.bf16.msra.mxu0 %v352
    %374 = vmatpush.bf16.msra.mxu0 %v351
    %375 = vmatmul.bf16.gmra.mxu0 %v301
    %v376 = vpop.f32.mrf.mxu0
    %v377 = vadd.f32 %v318, %v376
    %v378 = vpop.f32.mrf.mxu0
    %v379 = vadd.f32 %v318, %v378
    %380 = vdwg.mxu0
    %v381 = vpack.c.bf16 %v377, %v377
    %v382 = vpack.c.bf16 %v379, %v379
    %383 = vst [vmem:[%s6] sm:$0xf] %v381
    %384 = vst [vmem:[%s6 + $0x4] sm:$0xf] %v382
    // Predicated region
    $region42: #{basic_ffnn_forward.1} parent=1 // pred_check
      _
    $region43: #{basic_ffnn_forward.1} parent=1 // pred_check_branch
      %386 = sbr.rel (0) target = $region45
    $region44: #{basic_ffnn_forward.1} parent=1 // pred_region
      _
    $region45: #{basic_ffnn_forward.1} parent=1 // pred_fallthru
      _
    // Predicated region
    $region46: #{basic_ffnn_forward.1} parent=1 // pred_check
      _
    $region47: #{basic_ffnn_forward.1} parent=1 // pred_check_branch
      %388 = sbr.rel (0) target = $region49
    $region48: #{basic_ffnn_forward.1} parent=1 // pred_region
      _
    $region49: #{basic_ffnn_forward.1} parent=1 // pred_fallthru
      _
    %389 = vsyncpa [#allocation3], 1
    %390 = vsyncpa [#allocation5], 1
    %391 = vsyncpa [#allocation8], 1

</llo_original>
